<compile_context>
chip_gen: v7x
topology: tpu7x:2x2x1
jax: 0.10.0
libtpu: 0.0.40
codegen_flags: <defaults>
</compile_context>

<pallas_src>
import math

import jax
import jax.numpy as jnp
from jax import lax
from jax.experimental import pallas as pl
from jax.experimental.pallas import tpu as pltpu


# ----------------------------- kernels --------------------------------------


def _make_mean_kernel(gamma):
    def kernel(uid_ref, seq_ref, wv_ref, out_ref):
        seq = seq_ref[...].astype(jnp.float32)                        # (TB, S, D)
        uid = uid_ref[...].astype(jnp.float32)                        # (TB, D)
        nonzero = (jnp.sum(seq, axis=-1) != 0).astype(jnp.float32)    # (TB, S)
        count = jnp.sum(nonzero, axis=-1, keepdims=True)              # (TB, 1)
        mean = jnp.sum(seq, axis=1) * pl.reciprocal(count + 1e-9, approx=True)
        pooled = jnp.dot(mean, wv_ref[...],
                         preferred_element_type=jnp.float32)          # (TB, D)
        out_ref[...] = (gamma * uid + (1.0 - gamma) * pooled).astype(out_ref.dtype)
    return kernel


def _make_attn_kernel(gamma, tb, s, d, self_attention):
    """user_attention (self_attention=False) or self_attention kernel."""
    def kernel(*refs):
        if self_attention:
            uid_ref, seq_ref, wk_ref, bk_ref, wq_ref, wv_ref, out_ref = refs
        else:
            uid_ref, seq_ref, wk_ref, bk_ref, wv_ref, out_ref = refs

        seq = seq_ref[...].astype(jnp.float32)                        # (TB, S, D)
        uid = uid_ref[...].astype(jnp.float32)                        # (TB, D)

        # key = tanh(seq @ Wk + bk): single flattened lane-dense MXU dot.
        # (Reshape is layout-free when S % 8 == 0; otherwise Mosaic copies.)
        seq2d = seq.reshape(tb * s, d)
        key2d = jnp.tanh(
            jnp.dot(seq2d, wk_ref[...], preferred_element_type=jnp.float32)
            + bk_ref[...])                                            # (TB*S, D)
        key = key2d.reshape(tb, s, d)

        if self_attention:
            logits = jnp.sum(key * wq_ref[...], axis=-1)              # (TB, S)
        else:
            logits = jnp.sum(key * uid[:, None, :], axis=-1)          # (TB, S)

        # masked softmax, PyTorch semantics (masked logits forced to 0).
        mask = jnp.sum(seq, axis=-1) == 0                             # (TB, S)
        x = jnp.where(mask, 0.0, logits)
        e = jnp.exp(x)
        denom = jnp.sum(e, axis=1, keepdims=True) + 1e-9
        attn = e * pl.reciprocal(denom, approx=True)                  # (TB, S)

        # pooled[b] = attn[b] @ seq[b]: VPU weighted sum, no M=1 MXU matmuls.
        pooled = jnp.sum(attn[:, :, None] * seq, axis=1)              # (TB, D)

        out = jnp.dot(pooled, wv_ref[...],
                      preferred_element_type=jnp.float32)             # (TB, D)
        out_ref[...] = (gamma * uid + (1.0 - gamma) * out).astype(out_ref.dtype)
    return kernel


# ----------------------------- tiling helpers --------------------------------


def _vmem_config():
    """Returns (vmem_limit_bytes, tile_budget_bytes, min_grid_steps)."""
    kind = ""
    try:
        kind = jax.devices()[0].device_kind.lower()
    except Exception:
        pass
    if "v7" in kind or "7x" in kind:
        # v7x: only 64 MiB VMEM per TC, 2 TCs -> halved tile budget and >= 2
        # balanced grid steps for large problems.
        return 48 << 20, 36 << 20, 2
    # v5e / v6e: 128 MiB physical; default scoped limit is only 16/32 MiB.
    return 96 << 20, 72 << 20, 1


def _pick_block_b(B, S, D, itemsize, tile_budget, min_steps):
    """Largest batch tile (divisor of B) fitting the VMEM tile budget."""
    sub = 8  # kernel math is f32 -> 8-row sublane granularity
    # Per batch row: double-buffered seq DMA block + f32 in-kernel temporaries
    # (seq upcast, key) + uid/out blocks.  Conservative estimate.
    per_row = S * D * (2 * itemsize + 12) + 6 * D * 4
    fit_rows = max(1, tile_budget // per_row)
    total_seq_bytes = B * S * D * itemsize

    if B <= fit_rows and (min_steps <= 1 or total_seq_bytes < (1 << 20)
                          or B < 2 * sub):
        return B  # whole problem in one grid step: no per-step overhead

    target = min(B, fit_rows)
    if min_steps > 1:
        target = min(target, max(sub, -(-B // min_steps)))

    divisors = set()
    i = 1
    while i * i <= B:
        if B % i == 0:
            divisors.add(i)
            divisors.add(B // i)
        i += 1
    cands = sorted(d for d in divisors if d <= target)
    aligned = [d for d in cands if d % sub == 0]
    if aligned:
        return aligned[-1]
    return cands[-1] if cands else B


# ----------------------------- wrapper ---------------------------------------


def behavior_aggregator(uid_emb, sequence_emb, params, *, aggregator="mean",
                        gamma=0.5, block_b=None):
    """uid_emb: (B, D), sequence_emb: (B, S, D); dtype f32 or bf16 (no wrapper
    upcast -- inputs reach the kernel in their HBM dtype).

    params: dict with 'wv' (D, D); attention modes also need 'wk' (D, D) and
    'bk' (1, D); self_attention also 'wq' (1, D).  Weight matrices are in
    (in_dim, out_dim) layout, i.e. the kernel computes x @ W.
    """
    B, S, D = sequence_emb.shape
    assert uid_emb.shape == (B, D)
    out_dtype = uid_emb.dtype

    if aggregator not in ("mean", "user_attention", "self_attention"):
        # PyTorch: out = uid_emb, and gamma*uid + (1-gamma)*uid == uid.
        return uid_emb

    vmem_limit, tile_budget, min_steps = _vmem_config()
    itemsize = jnp.dtype(sequence_emb.dtype).itemsize
    if block_b is None:
        block_b = _pick_block_b(B, S, D, itemsize, tile_budget, min_steps)
    assert B % block_b == 0, "batch must be divisible by the batch tile"
    grid = (B // block_b,)

    uid_spec = pl.BlockSpec((block_b, D), lambda i: (i, 0))
    seq_spec = pl.BlockSpec((block_b, S, D), lambda i: (i, 0, 0))
    mat_spec = pl.BlockSpec((D, D), lambda i: (0, 0))   # VMEM-resident weights
    row_spec = pl.BlockSpec((1, D), lambda i: (0, 0))
    out_spec = pl.BlockSpec((block_b, D), lambda i: (i, 0))
    out_shape = jax.ShapeDtypeStruct((B, D), out_dtype)
    cparams = pltpu.CompilerParams(
        dimension_semantics=("parallel",),
        vmem_limit_bytes=vmem_limit)

    wv = params["wv"].astype(jnp.float32)

    if aggregator == "mean":
        return pl.pallas_call(
            _make_mean_kernel(gamma),
            out_shape=out_shape,
            grid=grid,
            in_specs=[uid_spec, seq_spec, mat_spec],
            out_specs=out_spec,
            compiler_params=cparams,
        )(uid_emb, sequence_emb, wv)

    wk = params["wk"].astype(jnp.float32)
    bk = params["bk"].astype(jnp.float32).reshape(1, D)

    if aggregator == "user_attention":
        return pl.pallas_call(
            _make_attn_kernel(gamma, block_b, S, D, self_attention=False),
            out_shape=out_shape,
            grid=grid,
            in_specs=[uid_spec, seq_spec, mat_spec, row_spec, mat_spec],
            out_specs=out_spec,
            compiler_params=cparams,
        )(uid_emb, sequence_emb, wk, bk, wv)

    wq = params["wq"].astype(jnp.float32).reshape(1, D)
    return pl.pallas_call(
        _make_attn_kernel(gamma, block_b, S, D, self_attention=True),
        out_shape=out_shape,
        grid=grid,
        in_specs=[uid_spec, seq_spec, mat_spec, row_spec, row_spec, mat_spec],
        out_specs=out_spec,
        compiler_params=cparams,
    )(uid_emb, sequence_emb, wk, bk, wq, wv)


# ----------------------------- test ------------------------------------------


if __name__ == "__main__":
    # D = 128 -> lane-dense stores; S = 8 -> layout-free (TB*S, D) reshape.
    B, S, D = 16, 8, 128
    gamma = 0.5

    key = jax.random.PRNGKey(0)
    k_uid, k_seq, k_wv, k_wk, k_bk, k_wq = jax.random.split(key, 6)

    uid_emb = jax.random.normal(k_uid, (B, D), dtype=jnp.float32)
    seq_emb = jax.random.normal(k_seq, (B, S, D), dtype=jnp.float32)

    # Zero-pad the tail of each behavior sequence to exercise the mask path.
    valid_len = (jnp.arange(B, dtype=jnp.int32) % S) + 1            # 1..S
    pos = jnp.arange(S, dtype=jnp.int32)[None, :]                   # (1, S)
    keep = (pos < valid_len[:, None]).astype(jnp.float32)[:, :, None]
    seq_emb = seq_emb * keep

    scale = 1.0 / math.sqrt(D)
    wv = jax.random.normal(k_wv, (D, D), jnp.float32) * scale
    wk = jax.random.normal(k_wk, (D, D), jnp.float32) * scale
    bk = jax.random.normal(k_bk, (1, D), jnp.float32) * scale
    wq = jax.random.normal(k_wq, (1, D), jnp.float32) * scale
    params = {"wv": wv, "wk": wk, "bk": bk, "wq": wq}

    hi = lax.Precision.HIGHEST

    def reference(aggregator, uid, seq):
        uid = uid.astype(jnp.float32)
        seq = seq.astype(jnp.float32)
        if aggregator == "mean":
            nz = (seq.sum(-1) != 0).astype(jnp.float32)
            pooled = seq.sum(1) / (nz.sum(-1, keepdims=True) + 1e-9)
        else:
            key_t = jnp.tanh(
                jnp.einsum('bsd,de->bse', seq, wk, precision=hi) + bk)
            mask = seq.sum(-1) == 0
            if aggregator == "user_attention":
                logits = jnp.einsum('bsd,bd->bs', key_t, uid, precision=hi)
            else:
                logits = jnp.einsum('bsd,d->bs', key_t, wq[0], precision=hi)
            x = jnp.where(mask, 0.0, logits)
            e = jnp.exp(x)
            attn = e / (e.sum(1, keepdims=True) + 1e-9)
            pooled = jnp.einsum('bs,bsd->bd', attn, seq, precision=hi)
        out = jnp.dot(pooled, wv, precision=hi)
        return gamma * uid + (1.0 - gamma) * out

    # f32 path (inputs flow through the DMA untouched).
    for agg in ("mean", "user_attention", "self_attention"):
        out = jax.block_until_ready(
            behavior_aggregator(uid_emb, seq_emb, params, aggregator=agg,
                                gamma=gamma))
        ref = jax.block_until_ready(reference(agg, uid_emb, seq_emb))
        assert out.shape == (B, D) and out.dtype == jnp.float32, agg
        err = float(jnp.max(jnp.abs(out - ref)))
        assert jnp.allclose(out, ref, atol=5e-3, rtol=5e-3), (agg, err)

    # bf16 path: halves the dominant seq HBM stream; f32 math inside kernel.
    uid_bf = uid_emb.astype(jnp.bfloat16)
    seq_bf = seq_emb.astype(jnp.bfloat16)
    out_bf = jax.block_until_ready(
        behavior_aggregator(uid_bf, seq_bf, params,
                            aggregator="user_attention", gamma=gamma))
    ref_bf = jax.block_until_ready(reference("user_attention", uid_bf, seq_bf))
    assert out_bf.shape == (B, D) and out_bf.dtype == jnp.bfloat16
    err_bf = float(jnp.max(jnp.abs(out_bf.astype(jnp.float32) - ref_bf)))
    assert jnp.allclose(out_bf.astype(jnp.float32), ref_bf,
                        atol=3e-2, rtol=3e-2), ("bf16", err_bf)

    print("KERNEL_OK")
</pallas_src>

<mosaic_0001>
module attributes {stable_mosaic.version = 11 : i64} {
  func.func @kernel(%arg0: i32, %arg1: memref<16x128xf32, #tpu.memory_space<vmem>>, %arg2: memref<16x8x128xf32, #tpu.memory_space<vmem>>, %arg3: memref<128x128xf32, #tpu.memory_space<vmem>>, %arg4: memref<16x128xf32, #tpu.memory_space<vmem>>) attributes {dimension_semantics = [#tpu.dimension_semantics<parallel>], iteration_bounds = array<i64: 1>, scalar_prefetch = 0 : i64, scratch_operands = 0 : i64, tpu.core_type = #tpu.core_type<tc>, window_params = [{transform_indices = @transform_0, window_bounds = array<i64: 16, 128>}, {transform_indices = @transform_1, window_bounds = array<i64: 16, 8, 128>}, {pipeline_mode = #tpu.pipeline_mode<synchronous>, transform_indices = @transform_2, window_bounds = array<i64: 128, 128>}, {transform_indices = @transform_3, window_bounds = array<i64: 16, 128>}]} {
    %c0 = arith.constant 0 : index
    %c0_0 = arith.constant 0 : index
    %c0_1 = arith.constant 0 : index
    %0 = vector.load %arg2[%c0, %c0_0, %c0_1] : memref<16x8x128xf32, #tpu.memory_space<vmem>>, vector<16x8x128xf32>
    %c0_2 = arith.constant 0 : index
    %c0_3 = arith.constant 0 : index
    %1 = vector.load %arg1[%c0_2, %c0_3] : memref<16x128xf32, #tpu.memory_space<vmem>>, vector<16x128xf32>
    %cst = arith.constant dense<0.000000e+00> : vector<16x8xf32>
    %2 = vector.multi_reduction <add>, %0, %cst [2] : vector<16x8x128xf32> to vector<16x8xf32>
    %cst_4 = arith.constant 0.000000e+00 : f32
    %3 = vector.broadcast %cst_4 : f32 to vector<16x8xf32>
    %4 = arith.cmpf one, %2, %3 : vector<16x8xf32>
    %5 = arith.extui %4 : vector<16x8xi1> to vector<16x8xi32>
    %6 = arith.sitofp %5 : vector<16x8xi32> to vector<16x8xf32>
    %cst_5 = arith.constant dense<0.000000e+00> : vector<16xf32>
    %7 = vector.multi_reduction <add>, %6, %cst_5 [1] : vector<16x8xf32> to vector<16xf32>
    %8 = vector.shape_cast %7 : vector<16xf32> to vector<16x1xf32>
    %cst_6 = arith.constant dense<0.000000e+00> : vector<16x128xf32>
    %9 = vector.multi_reduction <add>, %0, %cst_6 [1] : vector<16x8x128xf32> to vector<16x128xf32>
    %cst_7 = arith.constant 9.99999971E-10 : f32
    %10 = vector.broadcast %cst_7 : f32 to vector<16x1xf32>
    %11 = arith.addf %8, %10 : vector<16x1xf32>
    %12 = tpu.reciprocal %11 {approx = true} : vector<16x1xf32> -> vector<16x1xf32>
    %13 = vector.broadcast %12 : vector<16x1xf32> to vector<16x128xf32>
    %14 = arith.mulf %9, %13 : vector<16x128xf32>
    %c0_8 = arith.constant 0 : index
    %c0_9 = arith.constant 0 : index
    %15 = vector.load %arg3[%c0_8, %c0_9] : memref<128x128xf32, #tpu.memory_space<vmem>>, vector<128x128xf32>
    %cst_10 = arith.constant dense<0.000000e+00> : vector<16x128xf32>
    %16 = tpu.matmul %14, %15, %cst_10 {dimension_numbers = #tpu.dot_dimension_numbers<[1], [0], [0], [1], [0, 0, 1, 1], [], []>} : vector<16x128xf32>, vector<128x128xf32>, vector<16x128xf32> -> vector<16x128xf32>
    %cst_11 = arith.constant 5.000000e-01 : f32
    %17 = vector.broadcast %cst_11 : f32 to vector<16x128xf32>
    %18 = arith.mulf %17, %1 : vector<16x128xf32>
    %cst_12 = arith.constant 5.000000e-01 : f32
    %19 = vector.broadcast %cst_12 : f32 to vector<16x128xf32>
    %20 = arith.mulf %19, %16 : vector<16x128xf32>
    %21 = arith.addf %18, %20 : vector<16x128xf32>
    %c0_13 = arith.constant 0 : index
    %c0_14 = arith.constant 0 : index
    %22 = vector.load %arg4[%c0_13, %c0_14] : memref<16x128xf32, #tpu.memory_space<vmem>>, vector<16x128xf32>
    tpu.vector_store %arg4[%c0_13, %c0_14], %21 {strides = array<i32>} : memref<16x128xf32, #tpu.memory_space<vmem>>, vector<16x128xf32>,
    return
  }
  func.func @transform_0(%arg0: i32) -> (i32, i32) {
    %c0_i32 = arith.constant 0 : i32
    %c0_i32_0 = arith.constant 0 : i32
    return %arg0, %c0_i32 : i32, i32
  }
  func.func @transform_1(%arg0: i32) -> (i32, i32, i32) {
    %c0_i32 = arith.constant 0 : i32
    %c0_i32_0 = arith.constant 0 : i32
    %c0_i32_1 = arith.constant 0 : i32
    return %arg0, %c0_i32, %c0_i32_0 : i32, i32, i32
  }
  func.func @transform_2(%arg0: i32) -> (i32, i32) {
    %c0_i32 = arith.constant 0 : i32
    %c0_i32_0 = arith.constant 0 : i32
    %c0_i32_1 = arith.constant 0 : i32
    return %c0_i32, %c0_i32_0 : i32, i32
  }
  func.func @transform_3(%arg0: i32) -> (i32, i32) {
    %c0_i32 = arith.constant 0 : i32
    %c0_i32_0 = arith.constant 0 : i32
    return %arg0, %c0_i32 : i32, i32
  }
}

</mosaic_0001>

<llo_original>
// kernel: tpu_custom_call.1
$region0: #{tpu_custom_call.1}
  #allocation0 [shape = 'u32[]', space=smem, size = 0x4, offset = 0x4, fixed_abs, tag = 'smem constant byte address 0x4 - core index']
  #allocation1 [shape = 'u32[144,128]{1,0:T(1,128)}', space=vmem, size = 0x12000, scoped, tag = 'internal scratch']
  %s0 = inlined_call_operand.hbm [shape: f32[16,128], index: 0, kind: input, shape index: {}]
  %s1 = inlined_call_operand.hbm [shape: f32[16,8,128], index: 1, kind: input, shape index: {}]
  %s2 = inlined_call_operand.hbm [shape: f32[128,128], index: 2, kind: input, shape index: {}]
  %s3 = inlined_call_operand.hbm [shape: f32[16,128], index: 3, kind: output, shape index: {}]
  %s4 = sld [smem:[#allocation0]]
  $region34: #{tpu_custom_call.1} parent=0
    _
  %s6 = ssub.s32 1, %s4
  %s7 = scalar_select 0, %s6, %s4
  $region1: #{tpu_custom_call.1} parent=0
    #allocation2 [shape = 'u8[8192]{0}', space=vmem, size = 0x2000, scoped, tag = 'input window, operand 0, single buffered']
    #allocation3 [shape = 's32[1]{0}', space=sflag, size = 0x4, scoped, tag = 'scoped memory for tpu_custom_call.1']
    #allocation4 [shape = 's32[1]{0}', space=sflag, size = 0x4, scoped, tag = 'scoped memory for tpu_custom_call.1']
    #allocation5 [shape = 'u8[65536]{0}', space=vmem, size = 0x10000, scoped, tag = 'input window, operand 1, single buffered']
    #allocation6 [shape = 's32[1]{0}', space=sflag, size = 0x4, scoped, tag = 'scoped memory for tpu_custom_call.1']
    #allocation7 [shape = 'u8[65536]{0}', space=vmem, size = 0x10000, scoped, tag = 'input window, operand 2, single buffered']
    #allocation8 [shape = 'u8[8192]{0}', space=vmem, size = 0x2000, scoped, tag = 'output window, operand 0, single buffered']
    %8 = vsyncpa [#allocation3], 0
    %9 = vsyncpa [#allocation6], 0
    %10 = vsyncpa [#allocation4], 0
    // Predicated region
    $region2: #{tpu_custom_call.1} parent=1 // pred_check
      _
    $region3: #{tpu_custom_call.1} parent=1 // pred_check_branch
      %12 = sbr.rel (0) target = $region5
    $region4: #{tpu_custom_call.1} parent=1 // pred_region
      %s14 = ssub.s32 256, 256
      %15 = vsyncadd [#allocation3], %s14
      %s16 = sshll.u32 [#allocation2], 4
      %s17 = int_to_ptr.vmem [resolvable:$true] %s16
      %22 = dma.hbm_to_vmem [thread:$0]  %s0, 256, %s17, [#allocation3], 128, 128, 8
    $region5: #{tpu_custom_call.1} parent=1 // pred_fallthru
      _
    // Predicated region
    $region6: #{tpu_custom_call.1} parent=1 // pred_check
      _
    $region7: #{tpu_custom_call.1} parent=1 // pred_check_branch
      %24 = sbr.rel (0) target = $region9
    $region8: #{tpu_custom_call.1} parent=1 // pred_region
      %s26 = ssub.s32 2048, 2048
      %27 = vsyncadd [#allocation6], %s26
      %s28 = sshll.u32 [#allocation5], 4
      %s29 = int_to_ptr.vmem [resolvable:$true] %s28
      %34 = dma.hbm_to_vmem [thread:$0]  %s1, 2048, %s29, [#allocation6], 128, 128, 8
    $region9: #{tpu_custom_call.1} parent=1 // pred_fallthru
      _
    // Predicated region
    $region10: #{tpu_custom_call.1} parent=1 // pred_check
      _
    $region11: #{tpu_custom_call.1} parent=1 // pred_check_branch
      %36 = sbr.rel (0) target = $region13
    $region12: #{tpu_custom_call.1} parent=1 // pred_region
      %s38 = ssub.s32 2048, 2048
      %39 = vsyncadd [#allocation6], %s38
      %s40 = sshll.u32 [#allocation7], 4
      %s41 = int_to_ptr.vmem [resolvable:$true] %s40
      %46 = dma.hbm_to_vmem [thread:$0]  %s2, 2048, %s41, [#allocation6], 128, 128, 8
    $region13: #{tpu_custom_call.1} parent=1 // pred_fallthru
      _
    // Predicated region
    $region14: #{tpu_custom_call.1} parent=1 // pred_check
      _
    $region15: #{tpu_custom_call.1} parent=1 // pred_check_branch
      %48 = sbr.rel (0) target = $region17
    $region16: #{tpu_custom_call.1} parent=1 // pred_region
      %49 = dma.done [#allocation3], 256
    $region17: #{tpu_custom_call.1} parent=1 // pred_fallthru
      _
    // Predicated region
    $region18: #{tpu_custom_call.1} parent=1 // pred_check
      _
    $region19: #{tpu_custom_call.1} parent=1 // pred_check_branch
      %51 = sbr.rel (0) target = $region21
    $region20: #{tpu_custom_call.1} parent=1 // pred_region
      %52 = dma.done [#allocation6], 2048
    $region21: #{tpu_custom_call.1} parent=1 // pred_fallthru
      _
    // Predicated region
    $region22: #{tpu_custom_call.1} parent=1 // pred_check
      _
    $region23: #{tpu_custom_call.1} parent=1 // pred_check_branch
      %54 = sbr.rel (0) target = $region25
    $region24: #{tpu_custom_call.1} parent=1 // pred_region
      %55 = dma.done [#allocation6], 2048
    $region25: #{tpu_custom_call.1} parent=1 // pred_fallthru
      _
    %v56 = vld [vmem:[#allocation5] sm:$0xff]
    %v57 = vld [vmem:[#allocation5 + $0x8] sm:$0xff]
    %v58 = vld [vmem:[#allocation5 + $0x10] sm:$0xff]
    %v59 = vld [vmem:[#allocation5 + $0x18] sm:$0xff]
    %v60 = vld [vmem:[#allocation5 + $0x20] sm:$0xff]
    %v61 = vld [vmem:[#allocation5 + $0x28] sm:$0xff]
    %v62 = vld [vmem:[#allocation5 + $0x30] sm:$0xff]
    %v63 = vld [vmem:[#allocation5 + $0x38] sm:$0xff]
    %v64 = vld [vmem:[#allocation5 + $0x40] sm:$0xff]
    %v65 = vld [vmem:[#allocation5 + $0x48] sm:$0xff]
    %v66 = vld [vmem:[#allocation5 + $0x50] sm:$0xff]
    %v67 = vld [vmem:[#allocation5 + $0x58] sm:$0xff]
    %v68 = vld [vmem:[#allocation5 + $0x60] sm:$0xff]
    %v69 = vld [vmem:[#allocation5 + $0x68] sm:$0xff]
    %v70 = vld [vmem:[#allocation5 + $0x70] sm:$0xff]
    %v71 = vld [vmem:[#allocation5 + $0x78] sm:$0xff]
    %v72 = vld [vmem:[#allocation2] sm:$0xff]
    %v73 = vld [vmem:[#allocation2 + $0x8] sm:$0xff]
    %74 = vadd.xlane.f32.xlu0 %v56
    %v75 = vpop.xlane.xlu0 %74
    %76 = vadd.xlane.f32.xlu0 %v57
    %v77 = vpop.xlane.xlu0 %76
    %78 = vadd.xlane.f32.xlu0 %v58
    %v79 = vpop.xlane.xlu0 %78
    %80 = vadd.xlane.f32.xlu0 %v59
    %v81 = vpop.xlane.xlu0 %80
    %82 = vadd.xlane.f32.xlu0 %v60
    %v83 = vpop.xlane.xlu0 %82
    %84 = vadd.xlane.f32.xlu0 %v61
    %v85 = vpop.xlane.xlu0 %84
    %86 = vadd.xlane.f32.xlu0 %v62
    %v87 = vpop.xlane.xlu0 %86
    %88 = vadd.xlane.f32.xlu0 %v63
    %v89 = vpop.xlane.xlu0 %88
    %90 = vadd.xlane.f32.xlu0 %v64
    %v91 = vpop.xlane.xlu0 %90
    %92 = vadd.xlane.f32.xlu0 %v65
    %v93 = vpop.xlane.xlu0 %92
    %94 = vadd.xlane.f32.xlu0 %v66
    %v95 = vpop.xlane.xlu0 %94
    %96 = vadd.xlane.f32.xlu0 %v67
    %v97 = vpop.xlane.xlu0 %96
    %98 = vadd.xlane.f32.xlu0 %v68
    %v99 = vpop.xlane.xlu0 %98
    %100 = vadd.xlane.f32.xlu0 %v69
    %v101 = vpop.xlane.xlu0 %100
    %102 = vadd.xlane.f32.xlu0 %v70
    %v103 = vpop.xlane.xlu0 %102
    %104 = vadd.xlane.f32.xlu0 %v71
    %v105 = vpop.xlane.xlu0 %104
    %vm106 = vcmp.ne.f32.partialorder %v75, 0.0
    %vm107 = vcmp.ne.f32.partialorder %v77, 0.0
    %vm108 = vcmp.ne.f32.partialorder %v79, 0.0
    %vm109 = vcmp.ne.f32.partialorder %v81, 0.0
    %vm110 = vcmp.ne.f32.partialorder %v83, 0.0
    %vm111 = vcmp.ne.f32.partialorder %v85, 0.0
    %vm112 = vcmp.ne.f32.partialorder %v87, 0.0
    %vm113 = vcmp.ne.f32.partialorder %v89, 0.0
    %vm114 = vcmp.ne.f32.partialorder %v91, 0.0
    %vm115 = vcmp.ne.f32.partialorder %v93, 0.0
    %vm116 = vcmp.ne.f32.partialorder %v95, 0.0
    %vm117 = vcmp.ne.f32.partialorder %v97, 0.0
    %vm118 = vcmp.ne.f32.partialorder %v99, 0.0
    %vm119 = vcmp.ne.f32.partialorder %v101, 0.0
    %vm120 = vcmp.ne.f32.partialorder %v103, 0.0
    %vm121 = vcmp.ne.f32.partialorder %v105, 0.0
    %v122 = vsel %vm106, 1, 0
    %v123 = vsel %vm107, 1, 0
    %v124 = vsel %vm108, 1, 0
    %v125 = vsel %vm109, 1, 0
    %v126 = vsel %vm110, 1, 0
    %v127 = vsel %vm111, 1, 0
    %v128 = vsel %vm112, 1, 0
    %v129 = vsel %vm113, 1, 0
    %v130 = vsel %vm114, 1, 0
    %v131 = vsel %vm115, 1, 0
    %v132 = vsel %vm116, 1, 0
    %v133 = vsel %vm117, 1, 0
    %v134 = vsel %vm118, 1, 0
    %v135 = vsel %vm119, 1, 0
    %v136 = vsel %vm120, 1, 0
    %v137 = vsel %vm121, 1, 0
    %v138 = vcvt.s32.f32 %v122
    %v139 = vcvt.s32.f32 %v123
    %v140 = vcvt.s32.f32 %v124
    %v141 = vcvt.s32.f32 %v125
    %v142 = vcvt.s32.f32 %v126
    %v143 = vcvt.s32.f32 %v127
    %v144 = vcvt.s32.f32 %v128
    %v145 = vcvt.s32.f32 %v129
    %v146 = vcvt.s32.f32 %v130
    %v147 = vcvt.s32.f32 %v131
    %v148 = vcvt.s32.f32 %v132
    %v149 = vcvt.s32.f32 %v133
    %v150 = vcvt.s32.f32 %v134
    %v151 = vcvt.s32.f32 %v135
    %v152 = vcvt.s32.f32 %v136
    %v153 = vcvt.s32.f32 %v137
    %v170 = vlaneseq
    %v171 = vand.u32 %v170, 127
    %v172 = vlaneseq
    %v173 = vshrl.u32 %v172, 7
    %v174 = vsub.s32 %v171, %v173
    %v175 = vrot.slane %v138, %v174
    %v176 = vlaneseq
    %v177 = vshrl.u32 %v176, 7
    %v178 = vsub.s32 %v171, %v177
    %v179 = vrot.slane %v139, %v178
    %v180 = vlaneseq
    %v181 = vshrl.u32 %v180, 7
    %v182 = vsub.s32 %v171, %v181
    %v183 = vrot.slane %v140, %v182
    %v184 = vlaneseq
    %v185 = vshrl.u32 %v184, 7
    %v186 = vsub.s32 %v171, %v185
    %v187 = vrot.slane %v141, %v186
    %v188 = vlaneseq
    %v189 = vshrl.u32 %v188, 7
    %v190 = vsub.s32 %v171, %v189
    %v191 = vrot.slane %v142, %v190
    %v192 = vlaneseq
    %v193 = vshrl.u32 %v192, 7
    %v194 = vsub.s32 %v171, %v193
    %v195 = vrot.slane %v143, %v194
    %v196 = vlaneseq
    %v197 = vshrl.u32 %v196, 7
    %v198 = vsub.s32 %v171, %v197
    %v199 = vrot.slane %v144, %v198
    %v200 = vlaneseq
    %v201 = vshrl.u32 %v200, 7
    %v202 = vsub.s32 %v171, %v201
    %v203 = vrot.slane %v145, %v202
    %v204 = vlaneseq
    %v205 = vshrl.u32 %v204, 7
    %v206 = vsub.s32 %v171, %v205
    %v207 = vrot.slane %v146, %v206
    %v208 = vlaneseq
    %v209 = vshrl.u32 %v208, 7
    %v210 = vsub.s32 %v171, %v209
    %v211 = vrot.slane %v147, %v210
    %v212 = vlaneseq
    %v213 = vshrl.u32 %v212, 7
    %v214 = vsub.s32 %v171, %v213
    %v215 = vrot.slane %v148, %v214
    %v216 = vlaneseq
    %v217 = vshrl.u32 %v216, 7
    %v218 = vsub.s32 %v171, %v217
    %v219 = vrot.slane %v149, %v218
    %v220 = vlaneseq
    %v221 = vshrl.u32 %v220, 7
    %v222 = vsub.s32 %v171, %v221
    %v223 = vrot.slane %v150, %v222
    %v224 = vlaneseq
    %v225 = vshrl.u32 %v224, 7
    %v226 = vsub.s32 %v171, %v225
    %v227 = vrot.slane %v151, %v226
    %v228 = vlaneseq
    %v229 = vshrl.u32 %v228, 7
    %v230 = vsub.s32 %v171, %v229
    %v231 = vrot.slane %v152, %v230
    %v232 = vlaneseq
    %v233 = vshrl.u32 %v232, 7
    %v234 = vsub.s32 %v171, %v233
    %v235 = vrot.slane %v153, %v234
    %vm236 = vcmask 1041409
    %v237 = vsel %vm236, %v179, %v175
    %vm238 = vcmask 1042434
    %v239 = vsel %vm238, %v183, %v237
    %vm240 = vcmask 1043459
    %v241 = vsel %vm240, %v187, %v239
    %vm242 = vcmask 1044484
    %v243 = vsel %vm242, %v191, %v241
    %vm244 = vcmask 1045509
    %v245 = vsel %vm244, %v195, %v243
    %vm246 = vcmask 1046534
    %v247 = vsel %vm246, %v199, %v245
    %vm248 = vcmask 1047559
    %v249 = vsel %vm248, %v203, %v247
    %v250 = vsel %vm236, %v211, %v207
    %v251 = vsel %vm238, %v215, %v250
    %v252 = vsel %vm240, %v219, %v251
    %v253 = vsel %vm242, %v223, %v252
    %v254 = vsel %vm244, %v227, %v253
    %v255 = vsel %vm246, %v231, %v254
    %v256 = vsel %vm248, %v235, %v255
    %vm259 = vcmask 64512
    %v260 = vsel %vm259, %v249, 0.0
    %261 = vadd.xlane.f32.xlu0 %v260
    %v262 = vpop.xlane.xlu0 %261
    %v263 = vsel %vm259, %v256, 0.0
    %264 = vadd.xlane.f32.xlu0 %v263
    %v265 = vpop.xlane.xlu0 %264
    %v266 = vrot.slane %v56, 4
    %v267 = vadd.f32 %v56, %v266
    %v268 = vrot.slane %v267, 2
    %v269 = vadd.f32 %v267, %v268
    %v270 = vrot.slane %v269, 1
    %v271 = vadd.f32 %v269, %v270
    %v272 = vrot.slane %v57, 4
    %v273 = vadd.f32 %v57, %v272
    %v274 = vrot.slane %v273, 2
    %v275 = vadd.f32 %v273, %v274
    %v276 = vrot.slane %v275, 1
    %v277 = vadd.f32 %v275, %v276
    %v278 = vrot.slane %v58, 4
    %v279 = vadd.f32 %v58, %v278
    %v280 = vrot.slane %v279, 2
    %v281 = vadd.f32 %v279, %v280
    %v282 = vrot.slane %v281, 1
    %v283 = vadd.f32 %v281, %v282
    %v284 = vrot.slane %v59, 4
    %v285 = vadd.f32 %v59, %v284
    %v286 = vrot.slane %v285, 2
    %v287 = vadd.f32 %v285, %v286
    %v288 = vrot.slane %v287, 1
    %v289 = vadd.f32 %v287, %v288
    %v290 = vrot.slane %v60, 4
    %v291 = vadd.f32 %v60, %v290
    %v292 = vrot.slane %v291, 2
    %v293 = vadd.f32 %v291, %v292
    %v294 = vrot.slane %v293, 1
    %v295 = vadd.f32 %v293, %v294
    %v296 = vrot.slane %v61, 4
    %v297 = vadd.f32 %v61, %v296
    %v298 = vrot.slane %v297, 2
    %v299 = vadd.f32 %v297, %v298
    %v300 = vrot.slane %v299, 1
    %v301 = vadd.f32 %v299, %v300
    %v302 = vrot.slane %v62, 4
    %v303 = vadd.f32 %v62, %v302
    %v304 = vrot.slane %v303, 2
    %v305 = vadd.f32 %v303, %v304
    %v306 = vrot.slane %v305, 1
    %v307 = vadd.f32 %v305, %v306
    %v308 = vrot.slane %v63, 4
    %v309 = vadd.f32 %v63, %v308
    %v310 = vrot.slane %v309, 2
    %v311 = vadd.f32 %v309, %v310
    %v312 = vrot.slane %v311, 1
    %v313 = vadd.f32 %v311, %v312
    %v314 = vrot.slane %v64, 4
    %v315 = vadd.f32 %v64, %v314
    %v316 = vrot.slane %v315, 2
    %v317 = vadd.f32 %v315, %v316
    %v318 = vrot.slane %v317, 1
    %v319 = vadd.f32 %v317, %v318
    %v320 = vrot.slane %v65, 4
    %v321 = vadd.f32 %v65, %v320
    %v322 = vrot.slane %v321, 2
    %v323 = vadd.f32 %v321, %v322
    %v324 = vrot.slane %v323, 1
    %v325 = vadd.f32 %v323, %v324
    %v326 = vrot.slane %v66, 4
    %v327 = vadd.f32 %v66, %v326
    %v328 = vrot.slane %v327, 2
    %v329 = vadd.f32 %v327, %v328
    %v330 = vrot.slane %v329, 1
    %v331 = vadd.f32 %v329, %v330
    %v332 = vrot.slane %v67, 4
    %v333 = vadd.f32 %v67, %v332
    %v334 = vrot.slane %v333, 2
    %v335 = vadd.f32 %v333, %v334
    %v336 = vrot.slane %v335, 1
    %v337 = vadd.f32 %v335, %v336
    %v338 = vrot.slane %v68, 4
    %v339 = vadd.f32 %v68, %v338
    %v340 = vrot.slane %v339, 2
    %v341 = vadd.f32 %v339, %v340
    %v342 = vrot.slane %v341, 1
    %v343 = vadd.f32 %v341, %v342
    %v344 = vrot.slane %v69, 4
    %v345 = vadd.f32 %v69, %v344
    %v346 = vrot.slane %v345, 2
    %v347 = vadd.f32 %v345, %v346
    %v348 = vrot.slane %v347, 1
    %v349 = vadd.f32 %v347, %v348
    %v350 = vrot.slane %v70, 4
    %v351 = vadd.f32 %v70, %v350
    %v352 = vrot.slane %v351, 2
    %v353 = vadd.f32 %v351, %v352
    %v354 = vrot.slane %v353, 1
    %v355 = vadd.f32 %v353, %v354
    %v356 = vrot.slane %v71, 4
    %v357 = vadd.f32 %v71, %v356
    %v358 = vrot.slane %v357, 2
    %v359 = vadd.f32 %v357, %v358
    %v360 = vrot.slane %v359, 1
    %v361 = vadd.f32 %v359, %v360
    %v362 = vadd.f32 %v262, 1e-09
    %v363 = vadd.f32 %v265, 1e-09
    %v364 = vrcp.pop %v362
    %v365 = vrcp.pop %v363
    %v368 = vrot.slane %v364, 1
    %v369 = vrot.slane %v364, 2
    %v370 = vrot.slane %v364, 3
    %v371 = vrot.slane %v364, 4
    %v372 = vrot.slane %v364, 5
    %v373 = vrot.slane %v364, 6
    %v374 = vrot.slane %v364, 7
    %v375 = vrot.slane %v365, 1
    %v376 = vrot.slane %v365, 2
    %v377 = vrot.slane %v365, 3
    %v378 = vrot.slane %v365, 4
    %v379 = vrot.slane %v365, 5
    %v380 = vrot.slane %v365, 6
    %v381 = vrot.slane %v365, 7
    %v398 = vmul.f32 %v271, %v364
    %v399 = vmul.f32 %v277, %v368
    %v400 = vmul.f32 %v283, %v369
    %v401 = vmul.f32 %v289, %v370
    %v402 = vmul.f32 %v295, %v371
    %v403 = vmul.f32 %v301, %v372
    %v404 = vmul.f32 %v307, %v373
    %v405 = vmul.f32 %v313, %v374
    %v406 = vmul.f32 %v319, %v365
    %v407 = vmul.f32 %v325, %v375
    %v408 = vmul.f32 %v331, %v376
    %v409 = vmul.f32 %v337, %v377
    %v410 = vmul.f32 %v343, %v378
    %v411 = vmul.f32 %v349, %v379
    %v412 = vmul.f32 %v355, %v380
    %v413 = vmul.f32 %v361, %v381
    %v414 = vld [vmem:[#allocation7] sm:$0xff]
    %v415 = vld [vmem:[#allocation7 + $0x8] sm:$0xff]
    %v416 = vld [vmem:[#allocation7 + $0x10] sm:$0xff]
    %v417 = vld [vmem:[#allocation7 + $0x18] sm:$0xff]
    %v418 = vld [vmem:[#allocation7 + $0x20] sm:$0xff]
    %v419 = vld [vmem:[#allocation7 + $0x28] sm:$0xff]
    %v420 = vld [vmem:[#allocation7 + $0x30] sm:$0xff]
    %v421 = vld [vmem:[#allocation7 + $0x38] sm:$0xff]
    %v422 = vld [vmem:[#allocation7 + $0x40] sm:$0xff]
    %v423 = vld [vmem:[#allocation7 + $0x48] sm:$0xff]
    %v424 = vld [vmem:[#allocation7 + $0x50] sm:$0xff]
    %v425 = vld [vmem:[#allocation7 + $0x58] sm:$0xff]
    %v426 = vld [vmem:[#allocation7 + $0x60] sm:$0xff]
    %v427 = vld [vmem:[#allocation7 + $0x68] sm:$0xff]
    %v428 = vld [vmem:[#allocation7 + $0x70] sm:$0xff]
    %v429 = vld [vmem:[#allocation7 + $0x78] sm:$0xff]
    %v446 = vrot.slane %v399, 7
    %v447 = vsel %vm236, %v446, %v398
    %v448 = vrot.slane %v400, 6
    %v449 = vsel %vm238, %v448, %v447
    %v450 = vrot.slane %v401, 5
    %v451 = vsel %vm240, %v450, %v449
    %v452 = vrot.slane %v402, 4
    %v453 = vsel %vm242, %v452, %v451
    %v454 = vrot.slane %v403, 3
    %v455 = vsel %vm244, %v454, %v453
    %v456 = vrot.slane %v404, 2
    %v457 = vsel %vm246, %v456, %v455
    %v458 = vrot.slane %v405, 1
    %v459 = vsel %vm248, %v458, %v457
    %v460 = vrot.slane %v407, 7
    %v461 = vsel %vm236, %v460, %v406
    %v462 = vrot.slane %v408, 6
    %v463 = vsel %vm238, %v462, %v461
    %v464 = vrot.slane %v409, 5
    %v465 = vsel %vm240, %v464, %v463
    %v466 = vrot.slane %v410, 4
    %v467 = vsel %vm242, %v466, %v465
    %v468 = vrot.slane %v411, 3
    %v469 = vsel %vm244, %v468, %v467
    %v470 = vrot.slane %v412, 2
    %v471 = vsel %vm246, %v470, %v469
    %v472 = vrot.slane %v413, 1
    %v473 = vsel %vm248, %v472, %v471
    %476 = vmatprep.subr.mxu0 0.0
    %477 = vmatpush1.msra.mxu0 %v414
    %478 = vmatprep.subr.mxu0 0.0
    %479 = vmatpush1.msra.mxu0 %v415
    %480 = vmatprep.subr.mxu0 0.0
    %481 = vmatpush1.msra.mxu0 %v416
    %482 = vmatprep.subr.mxu0 0.0
    %483 = vmatpush1.msra.mxu0 %v417
    %484 = vmatprep.subr.mxu0 0.0
    %485 = vmatpush1.msra.mxu0 %v418
    %486 = vmatprep.subr.mxu0 0.0
    %487 = vmatpush1.msra.mxu0 %v419
    %488 = vmatprep.subr.mxu0 0.0
    %489 = vmatpush1.msra.mxu0 %v420
    %490 = vmatprep.subr.mxu0 0.0
    %491 = vmatpush1.msra.mxu0 %v421
    %492 = vmatprep.subr.mxu0 0.0
    %493 = vmatpush1.msra.mxu0 %v422
    %494 = vmatprep.subr.mxu0 0.0
    %495 = vmatpush1.msra.mxu0 %v423
    %496 = vmatprep.subr.mxu0 0.0
    %497 = vmatpush1.msra.mxu0 %v424
    %498 = vmatprep.subr.mxu0 0.0
    %499 = vmatpush1.msra.mxu0 %v425
    %500 = vmatprep.subr.mxu0 0.0
    %501 = vmatpush1.msra.mxu0 %v426
    %502 = vmatprep.subr.mxu0 0.0
    %503 = vmatpush1.msra.mxu0 %v427
    %504 = vmatprep.subr.mxu0 0.0
    %505 = vmatpush1.msra.mxu0 %v428
    %506 = vmatprep.subr.mxu0 0.0
    %507 = vmatpush1.msra.mxu0 %v429
    %508 = vmatprep.subr.mxu0 0.0
    %509 = vmatpush1.msra.mxu0 0.0
    %510 = vmatprep.subr.mxu0 0.0
    %511 = vmatpush1.msra.mxu0 0.0
    %512 = vmatprep.subr.mxu0 0.0
    %513 = vmatpush1.msra.mxu0 0.0
    %514 = vmatprep.subr.mxu0 0.0
    %515 = vmatpush1.msra.mxu0 0.0
    %516 = vmatprep.subr.mxu0 0.0
    %517 = vmatpush1.msra.mxu0 0.0
    %518 = vmatprep.subr.mxu0 0.0
    %519 = vmatpush1.msra.mxu0 0.0
    %520 = vmatprep.subr.mxu0 0.0
    %521 = vmatpush1.msra.mxu0 0.0
    %522 = vmatprep.subr.mxu0 0.0
    %523 = vmatpush1.msra.mxu0 0.0
    %524 = vmatprep.subr.mxu0 0.0
    %525 = vmatpush1.msra.mxu0 0.0
    %526 = vmatprep.subr.mxu0 0.0
    %527 = vmatpush1.msra.mxu0 0.0
    %528 = vmatprep.subr.mxu0 0.0
    %529 = vmatpush1.msra.mxu0 0.0
    %530 = vmatprep.subr.mxu0 0.0
    %531 = vmatpush1.msra.mxu0 0.0
    %532 = vmatprep.subr.mxu0 0.0
    %533 = vmatpush1.msra.mxu0 0.0
    %534 = vmatprep.subr.mxu0 0.0
    %535 = vmatpush1.msra.mxu0 0.0
    %536 = vmatprep.subr.mxu0 0.0
    %537 = vmatpush1.msra.mxu0 0.0
    %538 = vmatprep.subr.mxu0 0.0
    %539 = vmatpush1.msra.mxu0 0.0
    %540 = vmatprep.mubr.f32.mxu0 0.0
    %541 = vmatmul.mubr.f32.gmra.mrb[0].mxu0 %v459
    %v542 = vpop.f32.mrb[0].mxu0
    %v543 = vadd.f32 0.0, %v542
    %v544 = vpop.f32.mrb[0].mxu0
    %545 = vmatprep.mubr.f32.mxu0 0.0
    %546 = vmatmul.mubr.f32.gmra.mrb[0].mxu0 %v473
    %v547 = vpop.f32.mrb[0].mxu0
    %v548 = vadd.f32 0.0, %v547
    %v549 = vpop.f32.mrb[0].mxu0
    %550 = vdwg.mxu0
    %v551 = vmul.f32 %v72, 0.5
    %v552 = vmul.f32 %v73, 0.5
    %v553 = vmul.f32 %v543, 0.5
    %v554 = vmul.f32 %v548, 0.5
    %v555 = vadd.f32 %v551, %v553
    %v556 = vadd.f32 %v552, %v554
    %557 = vst [vmem:[#allocation8] sm:$0xff] %v555
    %558 = vst [vmem:[#allocation8 + $0x8] sm:$0xff] %v556
    // Predicated region
    $region26: #{tpu_custom_call.1} parent=1 // pred_check
      _
    $region27: #{tpu_custom_call.1} parent=1 // pred_check_branch
      %560 = sbr.rel (0) target = $region29
    $region28: #{tpu_custom_call.1} parent=1 // pred_region
      %s562 = ssub.s32 256, 256
      %563 = vsyncadd [#allocation4], %s562
      %s564 = sshll.u32 [#allocation8], 4
      %s565 = int_to_ptr.vmem [resolvable:$true] %s564
      %570 = dma.vmem_to_hbm [thread:$0]  %s565, 256, %s3, [#allocation4], 128, 128, 8
    $region29: #{tpu_custom_call.1} parent=1 // pred_fallthru
      _
    // Predicated region
    $region30: #{tpu_custom_call.1} parent=1 // pred_check
      _
    $region31: #{tpu_custom_call.1} parent=1 // pred_check_branch
      %572 = sbr.rel (0) target = $region33
    $region32: #{tpu_custom_call.1} parent=1 // pred_region
      %573 = dma.done [#allocation4], 256
    $region33: #{tpu_custom_call.1} parent=1 // pred_fallthru
      _
    %574 = vsyncpa [#allocation3], 1
    %575 = vsyncpa [#allocation6], 1
    %576 = vsyncpa [#allocation4], 1

</llo_original>
